<compile_context>
chip_gen: v7x
topology: tpu7x:2x2x1
jax: 0.10.0
libtpu: 0.0.40
codegen_flags: <defaults>
</compile_context>

<pallas_src>
import numpy as np
import jax
import jax.numpy as jnp
from jax.experimental import pallas as pl
from jax.experimental.pallas import tpu as pltpu

SIZES = [6, 3, 2, 1]
SS_PAD = 128          # pooled axis (36+9+4+1 = 50) padded to one full lane register
NEG = -1e30           # "masked out" shift value: ReLU(x + NEG) == 0


# ----------------------------------------------------------------------------
# Host glue: tiny linear operators for adaptive pooling / bilinear resize
# ----------------------------------------------------------------------------
def adaptive_avg_pool_matrix(in_len, out_len):
    """A[i, :] averages input window [floor(i*L/s), ceil((i+1)*L/s)) — PyTorch semantics."""
    m = np.zeros((out_len, in_len), dtype=np.float32)
    for i in range(out_len):
        start = (i * in_len) // out_len
        end = -((-(i + 1) * in_len) // out_len)  # ceil((i+1)*L/s)
        m[i, start:end] = 1.0 / float(end - start)
    return m


def bilinear_upsample_matrix(in_len, out_len):
    """PyTorch bilinear interpolate, align_corners=False."""
    m = np.zeros((out_len, in_len), dtype=np.float32)
    scale = in_len / out_len
    for i in range(out_len):
        src = (i + 0.5) * scale - 0.5
        src = max(src, 0.0)
        p0 = min(int(np.floor(src)), in_len - 1)
        lam = src - p0
        p1 = min(p0 + 1, in_len - 1)
        m[i, p0] += 1.0 - lam
        m[i, p1] += lam
    return m


def _build_operators(H, W, params, eps=1e-5):
    """Fuse the 4 branches into one pooling op, one upsample op, one weight slab."""
    HW = H * W
    pt_blocks, ut_blocks, offs = [], [], []
    off = 0
    for s in SIZES:
        P = np.kron(adaptive_avg_pool_matrix(H, s), adaptive_avg_pool_matrix(W, s))  # (s*s, HW)
        U = np.kron(bilinear_upsample_matrix(s, H), bilinear_upsample_matrix(s, W))  # (HW, s*s)
        pt_blocks.append(P.T)
        ut_blocks.append(U.T)
        offs.append(off)
        off += s * s
    ss_total = off  # 50

    pt = np.zeros((HW, SS_PAD), np.float32)
    pt[:, :ss_total] = np.concatenate(pt_blocks, axis=1)            # pool operator (padded)
    ut = np.zeros((SS_PAD, HW), np.float32)
    ut[:ss_total, :] = np.concatenate(ut_blocks, axis=0)            # upsample operator (padded)

    # per-branch Conv(1x1) + eval-mode BN folding -> one weight slab + shift/mask slab
    w_blocks, shift_rows = [], []
    for s in SIZES:
        p = params[s]
        bn_scale = p["gamma"] / jnp.sqrt(p["var"] + eps)            # (O,)
        w_blocks.append(p["w"] * bn_scale[:, None])                 # fold BN scale into conv w
        shift_rows.append(p["beta"] + (p["bias"] - p["mean"]) * bn_scale)
    w_all = jnp.concatenate(w_blocks, axis=0)                       # (4*O, C)
    shift_all = jnp.concatenate(shift_rows, axis=0)                 # (4*O,)
    O = params[SIZES[0]]["w"].shape[0]

    valid = np.zeros((len(SIZES) * O, SS_PAD), dtype=bool)          # block-diagonal validity
    for b, s in enumerate(SIZES):
        valid[b * O:(b + 1) * O, offs[b]:offs[b] + s * s] = True
    # keep shift/mask in f32 (the -1e30 mask trick must not be bf16-rounded)
    shift_mask = jnp.where(jnp.asarray(valid), shift_all[:, None],
                           jnp.float32(NEG))                        # (4*O, SS_PAD)

    return jnp.asarray(pt), jnp.asarray(ut), w_all, shift_mask


# ----------------------------------------------------------------------------
# Generation-aware VMEM budget + tile picking (biggest tile that fits)
# ----------------------------------------------------------------------------
def _vmem_budget_bytes():
    try:
        kind = jax.devices()[0].device_kind.lower()
    except Exception:
        kind = ""
    # v7x: 64 MiB VMEM per TensorCore; v5e/v6e: 128 MiB.  Keep ~25% headroom for
    # compiler-internal scratch / spills instead of claiming the whole thing.
    if "v7" in kind or "7x" in kind:
        phys = 64 * 1024 * 1024
    else:
        phys = 128 * 1024 * 1024
    return int(phys * 0.75)


def _pick_ctile(C, HW, O4, vmem_budget):
    """Largest channel tile (multiple of 8 dividing C) whose kernel-A footprint fits."""
    const = (2 * HW * SS_PAD * 2        # pooling operator (bf16, 2 buffers)
             + 2 * O4 * SS_PAD * 4      # shift/mask slab (f32, 2 buffers)
             + 2 * O4 * SS_PAD * 2      # bf16 activation output block (2 buffers)
             + O4 * SS_PAD * 4)         # f32 accumulator scratch

    def fits(tc):
        return const + 2 * tc * HW * 4 + 2 * O4 * tc * 2 <= vmem_budget

    cand = (min(C, 1024) // 8) * 8
    while cand >= 8:
        if C % cand == 0 and fits(cand):
            return cand
        cand -= 8
    return C                            # small / odd C: full-dim block is always legal


def _pick_otile(O4, HW, vmem_budget):
    """Largest output-channel tile (multiple of 8 dividing 4*O) for the upsample kernel."""
    const = 2 * SS_PAD * HW * 2         # upsample operator (bf16, 2 buffers)

    def fits(to):
        return const + 2 * to * SS_PAD * 2 + 2 * to * HW * 2 <= vmem_budget

    cand = (min(O4, 512) // 8) * 8
    while cand >= 8:
        if O4 % cand == 0 and fits(cand):
            return cand
        cand -= 8
    return O4


# ----------------------------------------------------------------------------
# Kernel A: adaptive avg-pool (all 4 sizes) + fused 1x1 conv/BN/ReLU reduction
# ----------------------------------------------------------------------------
def pool_conv_kernel(x_ref, pt_ref, w_ref, sm_ref, act_ref, acc_ref):
    k = pl.program_id(1)

    @pl.when(k == 0)
    def _():
        acc_ref[...] = jnp.zeros_like(acc_ref)

    # in-kernel f32 -> bf16 cast of the x tile (VPU, hidden under DMA) — avoids a
    # separate host-side cast pass over HBM.
    xt = x_ref[0].astype(jnp.bfloat16)                               # (tc, HW)
    # adaptive avg-pool of this channel tile for all 4 pyramid sizes at once
    pooled = jnp.dot(xt, pt_ref[...],
                     preferred_element_type=jnp.float32)             # (tc, SS_PAD)
    # 1x1 conv (BN scale folded into w); accumulate over channel tiles in f32
    acc_ref[...] += jnp.dot(w_ref[...], pooled.astype(jnp.bfloat16),
                            preferred_element_type=jnp.float32)      # (4*O, SS_PAD)

    @pl.when(k == pl.num_programs(1) - 1)
    def _():
        # bias + BN shift on valid pooled columns, -1e30 elsewhere -> ReLU zeroes
        # out-of-branch columns, leaving a block-diagonal bf16 activation slab.
        act_ref[0] = jnp.maximum(acc_ref[...] + sm_ref[...], 0.0).astype(act_ref.dtype)


# ----------------------------------------------------------------------------
# Kernel B: bilinear upsample of all 4 branches (lane-dense parallel output tiles)
# ----------------------------------------------------------------------------
def upsample_kernel(act_ref, ut_ref, o_ref):
    o_ref[0] = jnp.dot(act_ref[0], ut_ref[...],
                       preferred_element_type=jnp.float32).astype(o_ref.dtype)


def ppm_branches(x2d, pt, w_all, shift_mask, ut):
    """x2d: (N, C, HW) float32. Returns (N, 4*O, HW) bfloat16 branch outputs."""
    N, C, HW = x2d.shape
    O4 = w_all.shape[0]
    budget = _vmem_budget_bytes()

    tc = _pick_ctile(C, HW, O4, budget)
    kt = C // tc
    to = _pick_otile(O4, HW, budget)
    jb = O4 // to

    ptb = pt.astype(jnp.bfloat16)
    wb = w_all.astype(jnp.bfloat16)
    utb = ut.astype(jnp.bfloat16)

    # --- Kernel A: (N, 4*O, SS_PAD) bf16 activation slab (~tiny) -------------
    act = pl.pallas_call(
        pool_conv_kernel,
        out_shape=jax.ShapeDtypeStruct((N, O4, SS_PAD), jnp.bfloat16),
        grid_spec=pltpu.PrefetchScalarGridSpec(
            num_scalar_prefetch=0,
            grid=(N, kt),                                            # reduction axis last
            in_specs=[
                pl.BlockSpec((1, tc, HW), lambda n, k: (n, k, 0)),   # f32 x channel tile
                pl.BlockSpec((HW, SS_PAD), lambda n, k: (0, 0)),     # pooling op P_all^T
                pl.BlockSpec((O4, tc), lambda n, k: (0, k)),         # fused conv weights
                pl.BlockSpec((O4, SS_PAD), lambda n, k: (0, 0)),     # shift + block-diag mask
            ],
            out_specs=pl.BlockSpec((1, O4, SS_PAD), lambda n, k: (n, 0, 0)),
            scratch_shapes=[pltpu.VMEM((O4, SS_PAD), jnp.float32)],  # conv accumulator
        ),
        compiler_params=pltpu.CompilerParams(
            dimension_semantics=("parallel", "arbitrary"),
            vmem_limit_bytes=budget,
        ),
    )(x2d, ptb, wb, shift_mask)

    # --- Kernel B: (N, 4*O, HW) bf16 upsampled branch outputs ----------------
    out = pl.pallas_call(
        upsample_kernel,
        out_shape=jax.ShapeDtypeStruct((N, O4, HW), jnp.bfloat16),
        grid_spec=pltpu.PrefetchScalarGridSpec(
            num_scalar_prefetch=0,
            grid=(N, jb),                                            # fully parallel
            in_specs=[
                pl.BlockSpec((1, to, SS_PAD), lambda n, j: (n, j, 0)),
                pl.BlockSpec((SS_PAD, HW), lambda n, j: (0, 0)),     # upsample op U_all^T
            ],
            out_specs=pl.BlockSpec((1, to, HW), lambda n, j: (n, j, 0)),
        ),
        compiler_params=pltpu.CompilerParams(
            dimension_semantics=("parallel", "parallel"),
            vmem_limit_bytes=budget,
        ),
    )(act, utb)
    return out


# ----------------------------------------------------------------------------
# Full module forward
# ----------------------------------------------------------------------------
def pyramid_pooling_module(x, params):
    """x: (N, C, H, W) float32 (PyTorch NCHW). Returns (N, C + len(SIZES)*O, H, W)."""
    N, C, H, W = x.shape
    HW = H * W
    pt, ut, w_all, shift_mask = _build_operators(H, W, params)
    out = ppm_branches(x.reshape(N, C, HW), pt, w_all, shift_mask, ut)  # (N, 4*O, HW) bf16
    return jnp.concatenate([x, out.reshape(N, -1, H, W).astype(x.dtype)], axis=1)


def pyramid_pooling_module_ref(x, params):
    """Pure-JAX f32 reference with PyTorch semantics, for a sanity check."""
    N, C, H, W = x.shape
    x2d = x.reshape(N, C, H * W)
    eps = 1e-5
    results = [x]
    for s in SIZES:
        P = jnp.asarray(np.kron(adaptive_avg_pool_matrix(H, s),
                                adaptive_avg_pool_matrix(W, s)))
        U = jnp.asarray(np.kron(bilinear_upsample_matrix(s, H),
                                bilinear_upsample_matrix(s, W)))
        p = params[s]
        bn_scale = p["gamma"] / jnp.sqrt(p["var"] + eps)
        shift = p["beta"] + (p["bias"] - p["mean"]) * bn_scale
        pooled = jnp.einsum("nch,sh->ncs", x2d, P)
        y = jnp.einsum("oc,ncs->nos", p["w"], pooled)
        y = jnp.maximum(y * bn_scale[None, :, None] + shift[None, :, None], 0.0)
        out = jnp.einsum("nos,hs->noh", y, U)
        results.append(out.reshape(N, -1, H, W))
    return jnp.concatenate(results, axis=1)


if __name__ == "__main__":
    N, C_IN, C_OUT, H, W = 2, 4, 8, 16, 16

    key = jax.random.PRNGKey(0)
    k_x, k_p = jax.random.split(key)
    x = jax.random.normal(k_x, (N, C_IN, H, W), dtype=jnp.float32)

    # Deterministic parameter initialization (Conv2d 1x1 + BatchNorm2d per size).
    params = {}
    for idx, s in enumerate(SIZES):
        kw, kb, kg, kbe = jax.random.split(jax.random.fold_in(k_p, idx), 4)
        params[s] = dict(
            w=0.1 * jax.random.normal(kw, (C_OUT, C_IN), dtype=jnp.float32),
            bias=0.1 * jax.random.normal(kb, (C_OUT,), dtype=jnp.float32),
            gamma=1.0 + 0.1 * jax.random.normal(kg, (C_OUT,), dtype=jnp.float32),
            beta=0.1 * jax.random.normal(kbe, (C_OUT,), dtype=jnp.float32),
            mean=jnp.zeros((C_OUT,), dtype=jnp.float32),
            var=jnp.ones((C_OUT,), dtype=jnp.float32),
        )

    out = jax.block_until_ready(pyramid_pooling_module(x, params))
    assert out.shape == (N, C_IN + len(SIZES) * C_OUT, H, W), out.shape

    ref = jax.block_until_ready(pyramid_pooling_module_ref(x, params))
    # bf16 operands / bf16 branch output with f32 accumulation -> bf16 tolerance vs f32 ref
    np.testing.assert_allclose(np.asarray(out), np.asarray(ref), rtol=2e-2, atol=2e-2)

    print("KERNEL_OK")
</pallas_src>

<mosaic_0001>
module attributes {stable_mosaic.version = 11 : i64} {
  func.func @pool_conv_kernel(%arg0: i32, %arg1: i32, %arg2: memref<1x4x256xf32, #tpu.memory_space<vmem>>, %arg3: memref<256x128xbf16, #tpu.memory_space<vmem>>, %arg4: memref<32x4xbf16, #tpu.memory_space<vmem>>, %arg5: memref<32x128xf32, #tpu.memory_space<vmem>>, %arg6: memref<1x32x128xbf16, #tpu.memory_space<vmem>>, %arg7: memref<32x128xf32, #tpu.memory_space<vmem>>) attributes {dimension_semantics = [#tpu.dimension_semantics<parallel>, #tpu.dimension_semantics<arbitrary>], iteration_bounds = array<i64: 2, 1>, scalar_prefetch = 0 : i64, scratch_operands = 1 : i64, tpu.core_type = #tpu.core_type<tc>, window_params = [{transform_indices = @transform_0, window_bounds = array<i64: 1, 4, 256>}, {pipeline_mode = #tpu.pipeline_mode<synchronous>, transform_indices = @transform_1, window_bounds = array<i64: 256, 128>}, {transform_indices = @transform_2, window_bounds = array<i64: 32, 4>}, {pipeline_mode = #tpu.pipeline_mode<synchronous>, transform_indices = @transform_3, window_bounds = array<i64: 32, 128>}, {transform_indices = @transform_4, window_bounds = array<i64: 1, 32, 128>}]} {
    %c0_i32 = arith.constant 0 : i32
    %0 = arith.cmpi eq, %arg1, %c0_i32 : i32
    %1 = arith.extui %0 : i1 to i32
    %c0_i32_0 = arith.constant 0 : i32
    %2 = arith.cmpi ne, %1, %c0_i32_0 : i32
    scf.if %2 {
      %cst_14 = arith.constant 0.000000e+00 : f32
      %17 = vector.broadcast %cst_14 : f32 to vector<32x128xf32>
      %c0_15 = arith.constant 0 : index
      %c0_16 = arith.constant 0 : index
      %18 = vector.load %arg7[%c0_15, %c0_16] : memref<32x128xf32, #tpu.memory_space<vmem>>, vector<32x128xf32>
      tpu.vector_store %arg7[%c0_15, %c0_16], %17 {strides = array<i32>} : memref<32x128xf32, #tpu.memory_space<vmem>>, vector<32x128xf32>,
    } else {
    }
    %c0 = arith.constant 0 : index
    %c0_1 = arith.constant 0 : index
    %c0_2 = arith.constant 0 : index
    %3 = vector.load %arg2[%c0, %c0_1, %c0_2] : memref<1x4x256xf32, #tpu.memory_space<vmem>>, vector<1x4x256xf32>
    %4 = vector.shape_cast %3 : vector<1x4x256xf32> to vector<4x256xf32>
    %5 = arith.truncf %4 : vector<4x256xf32> to vector<4x256xbf16>
    %c0_3 = arith.constant 0 : index
    %c0_4 = arith.constant 0 : index
    %6 = vector.load %arg3[%c0_3, %c0_4] : memref<256x128xbf16, #tpu.memory_space<vmem>>, vector<256x128xbf16>
    %cst = arith.constant dense<0.000000e+00> : vector<4x128xf32>
    %7 = tpu.matmul %5, %6, %cst {dimension_numbers = #tpu.dot_dimension_numbers<[1], [0], [0], [1], [0, 0, 1, 1], [], []>} : vector<4x256xbf16>, vector<256x128xbf16>, vector<4x128xf32> -> vector<4x128xf32>
    %c0_5 = arith.constant 0 : index
    %c0_6 = arith.constant 0 : index
    %8 = vector.load %arg7[%c0_5, %c0_6] : memref<32x128xf32, #tpu.memory_space<vmem>>, vector<32x128xf32>
    %c0_7 = arith.constant 0 : index
    %c0_8 = arith.constant 0 : index
    %9 = vector.load %arg4[%c0_7, %c0_8] : memref<32x4xbf16, #tpu.memory_space<vmem>>, vector<32x4xbf16>
    %10 = arith.truncf %7 : vector<4x128xf32> to vector<4x128xbf16>
    %cst_9 = arith.constant dense<0.000000e+00> : vector<32x128xf32>
    %11 = tpu.matmul %9, %10, %cst_9 {dimension_numbers = #tpu.dot_dimension_numbers<[1], [0], [0], [1], [0, 0, 1, 1], [], []>} : vector<32x4xbf16>, vector<4x128xbf16>, vector<32x128xf32> -> vector<32x128xf32>
    %12 = arith.addf %8, %11 : vector<32x128xf32>
    %c0_10 = arith.constant 0 : index
    %c0_11 = arith.constant 0 : index
    %13 = vector.load %arg7[%c0_10, %c0_11] : memref<32x128xf32, #tpu.memory_space<vmem>>, vector<32x128xf32>
    tpu.vector_store %arg7[%c0_10, %c0_11], %12 {strides = array<i32>} : memref<32x128xf32, #tpu.memory_space<vmem>>, vector<32x128xf32>,
    %c0_i32_12 = arith.constant 0 : i32
    %14 = arith.cmpi eq, %arg1, %c0_i32_12 : i32
    %15 = arith.extui %14 : i1 to i32
    %c0_i32_13 = arith.constant 0 : i32
    %16 = arith.cmpi ne, %15, %c0_i32_13 : i32
    scf.if %16 {
      %c0_14 = arith.constant 0 : index
      %c0_15 = arith.constant 0 : index
      %17 = vector.load %arg7[%c0_14, %c0_15] : memref<32x128xf32, #tpu.memory_space<vmem>>, vector<32x128xf32>
      %c0_16 = arith.constant 0 : index
      %c0_17 = arith.constant 0 : index
      %18 = vector.load %arg5[%c0_16, %c0_17] : memref<32x128xf32, #tpu.memory_space<vmem>>, vector<32x128xf32>
      %19 = arith.addf %17, %18 : vector<32x128xf32>
      %cst_18 = arith.constant 0.000000e+00 : f32
      %20 = vector.broadcast %cst_18 : f32 to vector<32x128xf32>
      %21 = arith.maximumf %19, %20 : vector<32x128xf32>
      %22 = arith.truncf %21 : vector<32x128xf32> to vector<32x128xbf16>
      %c0_19 = arith.constant 0 : index
      %c0_20 = arith.constant 0 : index
      %c0_21 = arith.constant 0 : index
      %23 = vector.load %arg6[%c0_19, %c0_20, %c0_21] : memref<1x32x128xbf16, #tpu.memory_space<vmem>>, vector<1x32x128xbf16>
      %24 = vector.shape_cast %23 : vector<1x32x128xbf16> to vector<32x128xbf16>
      %25 = vector.shape_cast %22 : vector<32x128xbf16> to vector<1x32x128xbf16>
      tpu.vector_store %arg6[%c0_19, %c0_20, %c0_21], %25 {strides = array<i32>} : memref<1x32x128xbf16, #tpu.memory_space<vmem>>, vector<1x32x128xbf16>,
    } else {
    }
    return
  }
  func.func @transform_0(%arg0: i32, %arg1: i32) -> (i32, i32, i32) {
    %c0_i32 = arith.constant 0 : i32
    %c0_i32_0 = arith.constant 0 : i32
    return %arg0, %arg1, %c0_i32 : i32, i32, i32
  }
  func.func @transform_1(%arg0: i32, %arg1: i32) -> (i32, i32) {
    %c0_i32 = arith.constant 0 : i32
    %c0_i32_0 = arith.constant 0 : i32
    %c0_i32_1 = arith.constant 0 : i32
    return %c0_i32, %c0_i32_0 : i32, i32
  }
  func.func @transform_2(%arg0: i32, %arg1: i32) -> (i32, i32) {
    %c0_i32 = arith.constant 0 : i32
    %c0_i32_0 = arith.constant 0 : i32
    return %c0_i32, %arg1 : i32, i32
  }
  func.func @transform_3(%arg0: i32, %arg1: i32) -> (i32, i32) {
    %c0_i32 = arith.constant 0 : i32
    %c0_i32_0 = arith.constant 0 : i32
    %c0_i32_1 = arith.constant 0 : i32
    return %c0_i32, %c0_i32_0 : i32, i32
  }
  func.func @transform_4(%arg0: i32, %arg1: i32) -> (i32, i32, i32) {
    %c0_i32 = arith.constant 0 : i32
    %c0_i32_0 = arith.constant 0 : i32
    %c0_i32_1 = arith.constant 0 : i32
    return %arg0, %c0_i32, %c0_i32_0 : i32, i32, i32
  }
}

</mosaic_0001>

<llo_original>
// kernel: tpu_custom_call.1
$region0: #{tpu_custom_call.1}
  #allocation0 [shape = 'u32[]', space=smem, size = 0x4, offset = 0x4, fixed_abs, tag = 'smem constant byte address 0x4 - core index']
  #allocation1 [shape = 'u32[144,128]{1,0:T(1,128)}', space=vmem, size = 0x12000, scoped, tag = 'internal scratch']
  #allocation2 [shape = 'f32[32,128]{1,0:T(8,128)}', space=vmem, size = 0x4000, scoped, tag = 'scratch operand']
  %s0 = inlined_call_operand.hbm [shape: f32[2,4,256], index: 0, kind: input, shape index: {}]
  %s1 = inlined_call_operand.hbm [shape: bf16[256,128], index: 1, kind: input, shape index: {}]
  %s2 = inlined_call_operand.hbm [shape: bf16[32,4], index: 2, kind: input, shape index: {}]
  %s3 = inlined_call_operand.hbm [shape: f32[32,128], index: 3, kind: input, shape index: {}]
  %s4 = inlined_call_operand.hbm [shape: bf16[2,32,128], index: 4, kind: output, shape index: {}]
  %s5 = sld [smem:[#allocation0]]
  $region73: #{tpu_custom_call.1} parent=0
    _
  %s7 = ssub.s32 1, %s5
  %s8 = scalar_select 0, %s7, %s5
  $region1: #{tpu_custom_call.1} parent=0
    #allocation3 [shape = 'u8[8192]{0}', space=vmem, size = 0x2000, scoped, tag = 'input window, operand 0']
    #allocation4 [shape = 's32[2]{0}', space=sflag, size = 0x8, scoped, tag = 'scoped memory for tpu_custom_call.1']
    #allocation5 [shape = 's32[2]{0}', space=sflag, size = 0x8, scoped, tag = 'scoped memory for tpu_custom_call.1']
    #allocation6 [shape = 'u8[65536]{0}', space=vmem, size = 0x10000, scoped, tag = 'input window, operand 1, single buffered']
    #allocation7 [shape = 's32[1]{0}', space=sflag, size = 0x4, scoped, tag = 'scoped memory for tpu_custom_call.1']
    #allocation8 [shape = 'u8[8192]{0}', space=vmem, size = 0x2000, scoped, tag = 'input window, operand 2, single buffered']
    #allocation9 [shape = 'u8[16384]{0}', space=vmem, size = 0x4000, scoped, tag = 'input window, operand 3, single buffered']
    #allocation10 [shape = 's32[1]{0}', space=sflag, size = 0x4, scoped, tag = 'scoped memory for tpu_custom_call.1']
    #allocation11 [shape = 'u8[16384]{0}', space=vmem, size = 0x4000, scoped, tag = 'output window, operand 0']
    %9 = vsyncpa [#allocation4], 0
    %s10 = scalar_lea.sflag [#allocation4], 1
    %11 = vsyncpa %s10, 0
    %12 = vsyncpa [#allocation7], 0
    %13 = vsyncpa [#allocation10], 0
    %14 = vsyncpa [#allocation5], 0
    %s15 = scalar_lea.sflag [#allocation5], 1
    %16 = vsyncpa %s15, 0
    loop: start=0, step=1, limit=4
    $region2: #{tpu_custom_call.1} parent=1 // loop_pre_header
      _
    $region3: #{tpu_custom_call.1} parent=1 // loop_header
      %s18 = sphi 0, %s22
      %p19 = scmp.ge.s32.totalorder %s18, 4
      %s25 = sphi 0, %s37
      %s26 = sphi 0, %s33
      %s27 = sphi 0, %s25
      %s28 = sphi 0, %s26
      %s29 = sphi 0, %s27
      %s30 = sphi 0, %s28
      %s42 = sphi 0, %s44
      %s45 = sphi 0, %s42
      %s46 = sphi 0, %s45
      %s62 = sphi 0, %s46
      %s66 = sphi 0, %s66
      %s68 = sphi 0, %s66
      %s69 = sphi 0, %s68
      %s83 = sphi 0, %s69
      %s89 = sphi 0, %s91
      %s92 = sphi 0, %s89
      %s93 = sphi 0, %s92
      %s109 = sphi 0, %s93
      %s113 = sphi 0, %s113
      %s115 = sphi 0, %s113
      %s116 = sphi 0, %s115
      %s130 = sphi 0, %s116
      %s136 = sphi 0, %s138
      %s139 = sphi 0, %s136
      %s140 = sphi 0, %s139
      %s156 = sphi 0, %s140
    $region4: #{tpu_custom_call.1} parent=1 // loop_header_branch
      %21 = sbr.rel (%p19) target = $region8
    $region5: #{tpu_custom_call.1} parent=1 // loop_body
      %s23 = ssub.s32 %s18, 1
      %s24 = ssub.s32 %s18, 2
      %s31 = sadd.s32 1, %s26
      %p32 = scmp.ge.s32.totalorder %s31, 1
      %s33 = scalar_select %p32, 0, %s31
      %s34 = sadd.s32 1, %s25
      %s35 = scalar_select %p32, %s34, %s25
      %p36 = scmp.ge.s32.totalorder %s35, 2
      %s37 = scalar_select %p36, 0, %s35
      %s38 = ssub.s32 %s25, %s37
      %s39 = ssub.s32 %s26, %s33
      %s40 = sor.u32 %s38, %s39
      %p41 = scmp.eq.s32.totalorder %s40, 0
      %s43 = sadd.s32 %s42, 1
      %s44 = scalar_select %p41, %s42, %s43
      %p47 = pneg %p41
      %p48 = scmp.eq.s32.totalorder %s18, 1
      %p49 = por %p47, %p48
      %p50 = scmp.ne.s32.totalorder %s42, %s45
      %p51 = scmp.eq.s32.totalorder %s18, 0
      %p52 = por %p50, %p51
      %p53 = scmp.ne.s32.totalorder %s42, %s45
      %p54 = scmp.eq.s32.totalorder %s23, 1
      %p55 = por %p53, %p54
      %p56 = scmp.ne.s32.totalorder %s45, %s46
      %p57 = scmp.eq.s32.totalorder %s23, 0
      %p58 = por %p56, %p57
      %p59 = scmp.ne.s32.totalorder %s45, %s46
      %p60 = scmp.eq.s32.totalorder %s24, 1
      %p61 = por %p59, %p60
      %p63 = scmp.ne.s32.totalorder %s46, %s62
      %p64 = scmp.eq.s32.totalorder %s24, 0
      %p65 = por %p63, %p64
      %s67 = sadd.s32 %s66, 1
      %p70 = scmp.eq.s32.totalorder %s18, 1
      %p71 = scmp.ne.s32.totalorder %s66, %s68
      %p72 = scmp.eq.s32.totalorder %s18, 0
      %p73 = por %p71, %p72
      %p74 = scmp.ne.s32.totalorder %s66, %s68
      %p75 = scmp.eq.s32.totalorder %s23, 1
      %p76 = por %p74, %p75
      %p77 = scmp.ne.s32.totalorder %s68, %s69
      %p78 = scmp.eq.s32.totalorder %s23, 0
      %p79 = por %p77, %p78
      %p80 = scmp.ne.s32.totalorder %s68, %s69
      %p81 = scmp.eq.s32.totalorder %s24, 1
      %p82 = por %p80, %p81
      %p84 = scmp.ne.s32.totalorder %s69, %s83
      %p85 = scmp.eq.s32.totalorder %s24, 0
      %p86 = por %p84, %p85
      %s87 = ssub.s32 %s26, %s33
      %p88 = scmp.eq.s32.totalorder %s87, 0
      %s90 = sadd.s32 %s89, 1
      %s91 = scalar_select %p88, %s89, %s90
      %p94 = pneg %p88
      %p95 = scmp.eq.s32.totalorder %s18, 1
      %p96 = por %p94, %p95
      %p97 = scmp.ne.s32.totalorder %s89, %s92
      %p98 = scmp.eq.s32.totalorder %s18, 0
      %p99 = por %p97, %p98
      %p100 = scmp.ne.s32.totalorder %s89, %s92
      %p101 = scmp.eq.s32.totalorder %s23, 1
      %p102 = por %p100, %p101
      %p103 = scmp.ne.s32.totalorder %s92, %s93
      %p104 = scmp.eq.s32.totalorder %s23, 0
      %p105 = por %p103, %p104
      %p106 = scmp.ne.s32.totalorder %s92, %s93
      %p107 = scmp.eq.s32.totalorder %s24, 1
      %p108 = por %p106, %p107
      %p110 = scmp.ne.s32.totalorder %s93, %s109
      %p111 = scmp.eq.s32.totalorder %s24, 0
      %p112 = por %p110, %p111
      %s114 = sadd.s32 %s113, 1
      %p117 = scmp.eq.s32.totalorder %s18, 1
      %p118 = scmp.ne.s32.totalorder %s113, %s115
      %p119 = scmp.eq.s32.totalorder %s18, 0
      %p120 = por %p118, %p119
      %p121 = scmp.ne.s32.totalorder %s113, %s115
      %p122 = scmp.eq.s32.totalorder %s23, 1
      %p123 = por %p121, %p122
      %p124 = scmp.ne.s32.totalorder %s115, %s116
      %p125 = scmp.eq.s32.totalorder %s23, 0
      %p126 = por %p124, %p125
      %p127 = scmp.ne.s32.totalorder %s115, %s116
      %p128 = scmp.eq.s32.totalorder %s24, 1
      %p129 = por %p127, %p128
      %p131 = scmp.ne.s32.totalorder %s116, %s130
      %p132 = scmp.eq.s32.totalorder %s24, 0
      %p133 = por %p131, %p132
      %s134 = ssub.s32 %s25, %s37
      %p135 = scmp.eq.s32.totalorder %s134, 0
      %s137 = sadd.s32 %s136, 1
      %s138 = scalar_select %p135, %s136, %s137
      %p141 = pneg %p135
      %p142 = scmp.eq.s32.totalorder %s18, 1
      %p143 = por %p141, %p142
      %p144 = scmp.ne.s32.totalorder %s136, %s139
      %p145 = scmp.eq.s32.totalorder %s18, 0
      %p146 = por %p144, %p145
      %p147 = scmp.ne.s32.totalorder %s136, %s139
      %p148 = scmp.eq.s32.totalorder %s23, 1
      %p149 = por %p147, %p148
      %p150 = scmp.ne.s32.totalorder %s139, %s140
      %p151 = scmp.eq.s32.totalorder %s23, 0
      %p152 = por %p150, %p151
      %p153 = scmp.ne.s32.totalorder %s139, %s140
      %p154 = scmp.eq.s32.totalorder %s24, 1
      %p155 = por %p153, %p154
      %p157 = scmp.ne.s32.totalorder %s140, %s156
      %p158 = scmp.eq.s32.totalorder %s24, 0
      %p159 = por %p157, %p158
      %p160 = scmp.le.s32.totalorder 1, %s18
      %p161 = scmp.lt.s32.totalorder %s18, 3
      %p162 = pnand %p160, %p161
      %p163 = pneg %p162
      // Predicated region
      $region9: #{tpu_custom_call.1} parent=5 // pred_check
        _
      $region10: #{tpu_custom_call.1} parent=5 // pred_check_branch
        %165 = sbr.rel (%p162) target = $region12
      $region11: #{tpu_custom_call.1} parent=5 // pred_region
        %s166 = ssub.s32 %s18, 1
        // Predicated region
        $region13: #{tpu_custom_call.1} parent=11 // pred_check
          %p167 = pneg %p79
        $region14: #{tpu_custom_call.1} parent=11 // pred_check_branch
          %169 = sbr.rel (%p167) target = $region16
        $region15: #{tpu_custom_call.1} parent=11 // pred_region
          %s171 = ssub.s32 2048, 2048
          %172 = vsyncadd [#allocation7], %s171
          %s173 = sshll.u32 [#allocation6], 4
          %s174 = int_to_ptr.vmem [resolvable:$true] %s173
          %179 = dma.hbm_to_vmem [thread:$0]  %s1, 2048, %s174, [#allocation7], 64, 64, 4
        $region16: #{tpu_custom_call.1} parent=11 // pred_fallthru
          _
        // Predicated region
        $region17: #{tpu_custom_call.1} parent=11 // pred_check
          %p180 = pneg %p105
        $region18: #{tpu_custom_call.1} parent=11 // pred_check_branch
          %182 = sbr.rel (%p180) target = $region20
        $region19: #{tpu_custom_call.1} parent=11 // pred_region
          %s184 = ssub.s32 256, 256
          %185 = vsyncadd [#allocation7], %s184
          %s186 = smul.addr %s28, 64
          %s187 = scalar_lea.hbm %s2, %s186
          %s188 = sshll.u32 [#allocation8], 4
          %s189 = int_to_ptr.vmem [resolvable:$true] %s188
          %194 = dma.hbm_to_vmem [thread:$0]  %s187, 256, %s189, [#allocation7], 64, 64, 4
        $region20: #{tpu_custom_call.1} parent=11 // pred_fallthru
          _
        // Predicated region
        $region21: #{tpu_custom_call.1} parent=11 // pred_check
          %p195 = pneg %p126
        $region22: #{tpu_custom_call.1} parent=11 // pred_check_branch
          %197 = sbr.rel (%p195) target = $region24
        $region23: #{tpu_custom_call.1} parent=11 // pred_region
          %s199 = ssub.s32 512, 512
          %200 = vsyncadd [#allocation10], %s199
          %s201 = sshll.u32 [#allocation9], 4
          %s202 = int_to_ptr.vmem [resolvable:$true] %s201
          %207 = dma.hbm_to_vmem [thread:$0]  %s3, 512, %s202, [#allocation10], 128, 128, 8
        $region24: #{tpu_custom_call.1} parent=11 // pred_fallthru
          _
      $region12: #{tpu_custom_call.1} parent=5 // pred_fallthru
        _
      %p208 = scmp.lt.s32.totalorder %s18, 2
      // Predicated region
      $region25: #{tpu_custom_call.1} parent=5 // pred_check
        %p209 = pneg %p208
      $region26: #{tpu_custom_call.1} parent=5 // pred_check_branch
        %211 = sbr.rel (%p209) target = $region28
      $region27: #{tpu_custom_call.1} parent=5 // pred_region
        // Predicated region
        $region29: #{tpu_custom_call.1} parent=27 // pred_check
          %p212 = pneg %p52
        $region30: #{tpu_custom_call.1} parent=27 // pred_check_branch
          %214 = sbr.rel (%p212) target = $region32
        $region31: #{tpu_custom_call.1} parent=27 // pred_region
          %s215 = sand.u32 %s42, 1
          %s216 = scalar_lea.sflag [#allocation4], %s215
          %s217 = sand.u32 %s42, 1
          %s218 = smul.addr %s217, 8
          %s219 = scalar_lea.vmem [#allocation3], %s218
          %s221 = ssub.s32 128, 128
          %222 = vsyncadd %s216, %s221
          %s223 = smul.addr %s26, 2
          %s224 = smul.addr %s25, 2
          %s225 = sadd.s32 %s223, %s224
          %s226 = smul.addr %s225, 64
          %s227 = scalar_lea.hbm %s0, %s226
          %s229 = sshll.u32 %s219, 4
          %s230 = int_to_ptr.vmem [resolvable:$true] %s229
          %232 = dma.hbm_to_vmem [thread:$0]  %s227, 128, %s230, %s216
        $region32: #{tpu_custom_call.1} parent=27 // pred_fallthru
          _
      $region28: #{tpu_custom_call.1} parent=5 // pred_fallthru
        _
      %p233 = scmp.le.s32.totalorder 1, %s18
      %p234 = scmp.lt.s32.totalorder %s18, 3
      %p235 = pnand %p233, %p234
      %p236 = pneg %p235
      // Predicated region
      $region33: #{tpu_custom_call.1} parent=5 // pred_check
        _
      $region34: #{tpu_custom_call.1} parent=5 // pred_check_branch
        %238 = sbr.rel (%p235) target = $region36
      $region35: #{tpu_custom_call.1} parent=5 // pred_region
        %s239 = ssub.s32 %s18, 1
        %s240 = sand.u32 %s45, 1
        %s241 = scalar_lea.sflag [#allocation4], %s240
        %s242 = sand.u32 %s45, 1
        %s243 = smul.addr %s242, 8
        %s244 = scalar_lea.vmem [#allocation3], %s243
        // Predicated region
        $region37: #{tpu_custom_call.1} parent=35 // pred_check
          %p245 = pneg %p58
        $region38: #{tpu_custom_call.1} parent=35 // pred_check_branch
          %247 = sbr.rel (%p245) target = $region40
        $region39: #{tpu_custom_call.1} parent=35 // pred_region
          %248 = dma.done %s241, 128
        $region40: #{tpu_custom_call.1} parent=35 // pred_fallthru
          _
        // Predicated region
        $region41: #{tpu_custom_call.1} parent=35 // pred_check
          %p249 = pneg %p79
        $region42: #{tpu_custom_call.1} parent=35 // pred_check_branch
          %251 = sbr.rel (%p249) target = $region44
        $region43: #{tpu_custom_call.1} parent=35 // pred_region
          %252 = dma.done [#allocation7], 2048
        $region44: #{tpu_custom_call.1} parent=35 // pred_fallthru
          _
        // Predicated region
        $region45: #{tpu_custom_call.1} parent=35 // pred_check
          %p253 = pneg %p105
        $region46: #{tpu_custom_call.1} parent=35 // pred_check_branch
          %255 = sbr.rel (%p253) target = $region48
        $region47: #{tpu_custom_call.1} parent=35 // pred_region
          %256 = dma.done [#allocation7], 256
        $region48: #{tpu_custom_call.1} parent=35 // pred_fallthru
          _
        // Predicated region
        $region49: #{tpu_custom_call.1} parent=35 // pred_check
          %p257 = pneg %p126
        $region50: #{tpu_custom_call.1} parent=35 // pred_check_branch
          %259 = sbr.rel (%p257) target = $region52
        $region51: #{tpu_custom_call.1} parent=35 // pred_region
          %260 = dma.done [#allocation10], 512
        $region52: #{tpu_custom_call.1} parent=35 // pred_fallthru
          _
        %s261 = sand.u32 %s45, 1
        %s262 = scalar_lea.sflag [#allocation4], %s261
        %s263 = sand.u32 %s45, 1
        %s264 = smul.addr %s263, 8
        %s265 = scalar_lea.vmem [#allocation3], %s264
        %p266 = pneg %p58
        %p267 = pneg %p55
        %p268 = pneg %p79
        %p269 = pneg %p76
        %p270 = pneg %p105
        %p271 = pneg %p102
        %p272 = pneg %p126
        %p273 = pneg %p123
        %p274 = pneg %p152
        %p275 = pneg %p149
        %s276 = sand.u32 %s139, 1
        %s277 = scalar_lea.sflag [#allocation5], %s276
        %s278 = sand.u32 %s139, 1
        %s279 = smul.addr %s278, 16
        %s280 = scalar_lea.vmem [#allocation11], %s279
        %p282 = scmp.eq.s32.totalorder %s28, 0
        // Predicated region
        $region53: #{tpu_custom_call.1} parent=35 // pred_check
          %p283 = pneg %p282
        $region54: #{tpu_custom_call.1} parent=35 // pred_check_branch
          %285 = sbr.rel (%p283) target = $region56
        $region55: #{tpu_custom_call.1} parent=35 // pred_region
          %286 = vst [vmem:[#allocation2] sm:$0xff] 0.0
          %287 = vst [vmem:[#allocation2 + $0x8] sm:$0xff] 0.0
          %288 = vst [vmem:[#allocation2 + $0x10] sm:$0xff] 0.0
          %289 = vst [vmem:[#allocation2 + $0x18] sm:$0xff] 0.0
        $region56: #{tpu_custom_call.1} parent=35 // pred_fallthru
          _
        %v290 = vld [vmem:[%s244] sm:$0xff]
        %v292 = vcombine.high %v290, %v290
        %v294 = vpack.c.bf16 %v290, %v290
        %v295 = vpack.c.bf16 %v292, %v292
        %v296 = vld [vmem:[#allocation6] sm:$0xf]
        %v297 = vld [vmem:[#allocation6 + $0x4] sm:$0xf]
        %v298 = vld [vmem:[#allocation6 + $0x8] sm:$0xf]
        %v299 = vld [vmem:[#allocation6 + $0xc] sm:$0xf]
        %v300 = vld [vmem:[#allocation6 + $0x10] sm:$0xf]
        %v301 = vld [vmem:[#allocation6 + $0x14] sm:$0xf]
        %v302 = vld [vmem:[#allocation6 + $0x18] sm:$0xf]
        %v303 = vld [vmem:[#allocation6 + $0x1c] sm:$0xf]
        %v304 = vld [vmem:[#allocation6 + $0x20] sm:$0xf]
        %v305 = vld [vmem:[#allocation6 + $0x24] sm:$0xf]
        %v306 = vld [vmem:[#allocation6 + $0x28] sm:$0xf]
        %v307 = vld [vmem:[#allocation6 + $0x2c] sm:$0xf]
        %v308 = vld [vmem:[#allocation6 + $0x30] sm:$0xf]
        %v309 = vld [vmem:[#allocation6 + $0x34] sm:$0xf]
        %v310 = vld [vmem:[#allocation6 + $0x38] sm:$0xf]
        %v311 = vld [vmem:[#allocation6 + $0x3c] sm:$0xf]
        %v312 = vld [vmem:[#allocation6 + $0x40] sm:$0xf]
        %v313 = vld [vmem:[#allocation6 + $0x44] sm:$0xf]
        %v314 = vld [vmem:[#allocation6 + $0x48] sm:$0xf]
        %v315 = vld [vmem:[#allocation6 + $0x4c] sm:$0xf]
        %v316 = vld [vmem:[#allocation6 + $0x50] sm:$0xf]
        %v317 = vld [vmem:[#allocation6 + $0x54] sm:$0xf]
        %v318 = vld [vmem:[#allocation6 + $0x58] sm:$0xf]
        %v319 = vld [vmem:[#allocation6 + $0x5c] sm:$0xf]
        %v320 = vld [vmem:[#allocation6 + $0x60] sm:$0xf]
        %v321 = vld [vmem:[#allocation6 + $0x64] sm:$0xf]
        %v322 = vld [vmem:[#allocation6 + $0x68] sm:$0xf]
        %v323 = vld [vmem:[#allocation6 + $0x6c] sm:$0xf]
        %v324 = vld [vmem:[#allocation6 + $0x70] sm:$0xf]
        %v325 = vld [vmem:[#allocation6 + $0x74] sm:$0xf]
        %v326 = vld [vmem:[#allocation6 + $0x78] sm:$0xf]
        %v327 = vld [vmem:[#allocation6 + $0x7c] sm:$0xf]
        %v360 = vunpack.c.l.b16 %v296
        %v361 = vunpack.c.l.b16 %v297
        %v362 = vunpack.c.l.b16 %v298
        %v363 = vunpack.c.l.b16 %v299
        %v364 = vunpack.c.l.b16 %v300
        %v365 = vunpack.c.l.b16 %v301
        %v366 = vunpack.c.l.b16 %v302
        %v367 = vunpack.c.l.b16 %v303
        %v368 = vunpack.c.l.b16 %v304
        %v369 = vunpack.c.l.b16 %v305
        %v370 = vunpack.c.l.b16 %v306
        %v371 = vunpack.c.l.b16 %v307
        %v372 = vunpack.c.l.b16 %v308
        %v373 = vunpack.c.l.b16 %v309
        %v374 = vunpack.c.l.b16 %v310
        %v375 = vunpack.c.l.b16 %v311
        %v376 = vunpack.c.l.b16 %v312
        %v377 = vunpack.c.l.b16 %v313
        %v378 = vunpack.c.l.b16 %v314
        %v379 = vunpack.c.l.b16 %v315
        %v380 = vunpack.c.l.b16 %v316
        %v381 = vunpack.c.l.b16 %v317
        %v382 = vunpack.c.l.b16 %v318
        %v383 = vunpack.c.l.b16 %v319
        %v384 = vunpack.c.l.b16 %v320
        %v385 = vunpack.c.l.b16 %v321
        %v386 = vunpack.c.l.b16 %v322
        %v387 = vunpack.c.l.b16 %v323
        %v388 = vunpack.c.l.b16 %v324
        %v389 = vunpack.c.l.b16 %v325
        %v390 = vunpack.c.l.b16 %v326
        %v391 = vunpack.c.l.b16 %v327
        %v392 = vpack.c.b16 %v361, %v360
        %v393 = vpack.c.b16 %v363, %v362
        %v394 = vpack.c.b16 %v365, %v364
        %v395 = vpack.c.b16 %v367, %v366
        %v396 = vpack.c.b16 %v369, %v368
        %v397 = vpack.c.b16 %v371, %v370
        %v398 = vpack.c.b16 %v373, %v372
        %v399 = vpack.c.b16 %v375, %v374
        %v400 = vpack.c.b16 %v377, %v376
        %v401 = vpack.c.b16 %v379, %v378
        %v402 = vpack.c.b16 %v381, %v380
        %v403 = vpack.c.b16 %v383, %v382
        %v404 = vpack.c.b16 %v385, %v384
        %v405 = vpack.c.b16 %v387, %v386
        %v406 = vpack.c.b16 %v389, %v388
        %v407 = vpack.c.b16 %v391, %v390
        %424 = vmatprep.subr.bf16.mxu0 0
        %425 = vmatpush1.bf16.msra.mxu0 %v392
        %426 = vmatprep.subr.bf16.mxu0 0
        %427 = vmatpush1.bf16.msra.mxu0 %v393
        %428 = vmatprep.subr.bf16.mxu0 0
        %429 = vmatpush1.bf16.msra.mxu0 %v394
        %430 = vmatprep.subr.bf16.mxu0 0
        %431 = vmatpush1.bf16.msra.mxu0 %v395
        %432 = vmatprep.subr.bf16.mxu0 0
        %433 = vmatpush1.bf16.msra.mxu0 %v396
        %434 = vmatprep.subr.bf16.mxu0 0
        %435 = vmatpush1.bf16.msra.mxu0 %v397
        %436 = vmatprep.subr.bf16.mxu0 0
        %437 = vmatpush1.bf16.msra.mxu0 %v398
        %438 = vmatprep.subr.bf16.mxu0 0
        %439 = vmatpush1.bf16.msra.mxu0 %v399
        %440 = vmatprep.subr.bf16.mxu0 0
        %441 = vmatpush1.bf16.msra.mxu0 %v400
        %442 = vmatprep.subr.bf16.mxu0 0
        %443 = vmatpush1.bf16.msra.mxu0 %v401
        %444 = vmatprep.subr.bf16.mxu0 0
        %445 = vmatpush1.bf16.msra.mxu0 %v402
        %446 = vmatprep.subr.bf16.mxu0 0
        %447 = vmatpush1.bf16.msra.mxu0 %v403
        %448 = vmatprep.subr.bf16.mxu0 0
        %449 = vmatpush1.bf16.msra.mxu0 %v404
        %450 = vmatprep.subr.bf16.mxu0 0
        %451 = vmatpush1.bf16.msra.mxu0 %v405
        %452 = vmatprep.subr.bf16.mxu0 0
        %453 = vmatpush1.bf16.msra.mxu0 %v406
        %454 = vmatprep.subr.bf16.mxu0 0
        %455 = vmatpush1.bf16.msra.mxu0 %v407
        %456 = vmatprep.mubr.bf16.mxu0 %v295
        %457 = vmatmul.mubr.bf16.gmra.mrb[0].mxu0 %v294
        %v458 = vpop.f32.mrb[0].mxu0
        %v459 = vadd.f32 0.0, %v458
        %v460 = vpop.f32.mrb[0].mxu0
        %v461 = vpop.f32.mrb[0].mxu0
        %v462 = vpop.f32.mrb[0].mxu0
        %463 = vdwg.mxu0
        %v464 = vld [vmem:[#allocation2] sm:$0xff]
        %v465 = vld [vmem:[#allocation2 + $0x8] sm:$0xff]
        %v466 = vld [vmem:[#allocation2 + $0x10] sm:$0xff]
        %v467 = vld [vmem:[#allocation2 + $0x18] sm:$0xff]
        %v468 = vld [vmem:[#allocation8] sm:$0xf]
        %v469 = vld [vmem:[#allocation8 + $0x4] sm:$0xf]
        %v470 = vld [vmem:[#allocation8 + $0x8] sm:$0xf]
        %v471 = vld [vmem:[#allocation8 + $0xc] sm:$0xf]
        %v472 = vpack.c.bf16 %v459, %v459
        %v477 = vunpack.c.l.b16 %v468
        %v478 = vunpack.c.l.b16 %v469
        %v479 = vunpack.c.l.b16 %v470
        %v480 = vunpack.c.l.b16 %v471
        %v481 = vpack.c.b16 %v478, %v477
        %v482 = vpack.c.b16 %v480, %v479
        %vm483 = vcmask 31744
        %v485 = vsel %vm483, %v481, 0
        %v488 = vsel %vm483, %v482, 0
        %vm490 = vcmask 1041408
        %v492 = vsel %vm490, %v472, 0
        %494 = vmatprep.subr.bf16.mxu0 0
        %495 = vmatpush1.bf16.msra.mxu0 %v492
        %496 = vmatprep.subr.bf16.mxu0 0
        %497 = vmatpush1.bf16.msra.mxu0 0
        %498 = vmatprep.subr.bf16.mxu0 0
        %499 = vmatpush1.bf16.msra.mxu0 0
        %500 = vmatprep.subr.bf16.mxu0 0
        %501 = vmatpush1.bf16.msra.mxu0 0
        %502 = vmatprep.subr.bf16.mxu0 0
        %503 = vmatpush1.bf16.msra.mxu0 0
        %504 = vmatprep.subr.bf16.mxu0 0
        %505 = vmatpush1.bf16.msra.mxu0 0
        %506 = vmatprep.subr.bf16.mxu0 0
        %507 = vmatpush1.bf16.msra.mxu0 0
        %508 = vmatprep.subr.bf16.mxu0 0
        %509 = vmatpush1.bf16.msra.mxu0 0
        %510 = vmatprep.subr.bf16.mxu0 0
        %511 = vmatpush1.bf16.msra.mxu0 0
        %512 = vmatprep.subr.bf16.mxu0 0
        %513 = vmatpush1.bf16.msra.mxu0 0
        %514 = vmatprep.subr.bf16.mxu0 0
        %515 = vmatpush1.bf16.msra.mxu0 0
        %516 = vmatprep.subr.bf16.mxu0 0
        %517 = vmatpush1.bf16.msra.mxu0 0
        %518 = vmatprep.subr.bf16.mxu0 0
        %519 = vmatpush1.bf16.msra.mxu0 0
        %520 = vmatprep.subr.bf16.mxu0 0
        %521 = vmatpush1.bf16.msra.mxu0 0
        %522 = vmatprep.subr.bf16.mxu0 0
        %523 = vmatpush1.bf16.msra.mxu0 0
        %524 = vmatprep.subr.bf16.mxu0 0
        %525 = vmatpush1.bf16.msra.mxu0 0
        %526 = vmatprep.mubr.bf16.mxu0 0
        %527 = vmatmul.mubr.bf16.gmra.mrb[0].mxu0 %v485
        %v528 = vpop.f32.mrb[0].mxu0
        %v529 = vadd.f32 0.0, %v528
        %v530 = vpop.f32.mrb[0].mxu0
        %v531 = vpop.f32.mrb[0].mxu0
        %v532 = vadd.f32 0.0, %v531
        %v533 = vpop.f32.mrb[0].mxu0
        %534 = vmatprep.mubr.bf16.mxu0 0
        %535 = vmatmul.mubr.bf16.gmra.mrb[0].mxu0 %v488
        %v536 = vpop.f32.mrb[0].mxu0
        %v537 = vadd.f32 0.0, %v536
        %v538 = vpop.f32.mrb[0].mxu0
        %v539 = vpop.f32.mrb[0].mxu0
        %v540 = vadd.f32 0.0, %v539
        %v541 = vpop.f32.mrb[0].mxu0
        %542 = vdwg.mxu0
        %v543 = vadd.f32 %v464, %v529
        %v544 = vadd.f32 %v465, %v532
        %v545 = vadd.f32 %v466, %v537
        %v546 = vadd.f32 %v467, %v540
        %547 = vst [vmem:[#allocation2] sm:$0xff] %v543
        %548 = vst [vmem:[#allocation2 + $0x8] sm:$0xff] %v544
        %549 = vst [vmem:[#allocation2 + $0x10] sm:$0xff] %v545
        %550 = vst [vmem:[#allocation2 + $0x18] sm:$0xff] %v546
        // Predicated region
        $region57: #{tpu_custom_call.1} parent=35 // pred_check
          %p551 = pneg %p282
        $region58: #{tpu_custom_call.1} parent=35 // pred_check_branch
          %553 = sbr.rel (%p551) target = $region60
        $region59: #{tpu_custom_call.1} parent=35 // pred_region
          %v554 = vld [vmem:[#allocation2] sm:$0xff]
          %v555 = vld [vmem:[#allocation2 + $0x8] sm:$0xff]
          %v556 = vld [vmem:[#allocation2 + $0x10] sm:$0xff]
          %v557 = vld [vmem:[#allocation2 + $0x18] sm:$0xff]
          %v558 = vld [vmem:[#allocation9] sm:$0xff]
          %v559 = vld [vmem:[#allocation9 + $0x8] sm:$0xff]
          %v560 = vld [vmem:[#allocation9 + $0x10] sm:$0xff]
          %v561 = vld [vmem:[#allocation9 + $0x18] sm:$0xff]
          %v562 = vadd.f32 %v554, %v558
          %v563 = vadd.f32 %v555, %v559
          %v564 = vadd.f32 %v556, %v560
          %v565 = vadd.f32 %v557, %v561
          %v566 = vmax.f32 %v562, 0.0
          %v567 = vmax.f32 %v563, 0.0
          %v568 = vmax.f32 %v564, 0.0
          %v569 = vmax.f32 %v565, 0.0
          %v570 = vpack.c.bf16 %v567, %v566
          %v571 = vpack.c.bf16 %v569, %v568
          %v574 = vunpack.c.l.b16 %v570
          %v575 = vunpack.c.h.b16 %v570
          %v576 = vunpack.c.l.b16 %v571
          %v577 = vunpack.c.h.b16 %v571
          %v578 = vpack.c.b16 %v574, %v574
          %v579 = vpack.c.b16 %v575, %v575
          %v580 = vpack.c.b16 %v576, %v576
          %v581 = vpack.c.b16 %v577, %v577
          %586 = vst [vmem:[%s280] sm:$0xf] %v578
          %587 = vst [vmem:[%s280 + $0x4] sm:$0xf] %v579
          %588 = vst [vmem:[%s280 + $0x8] sm:$0xf] %v580
          %589 = vst [vmem:[%s280 + $0xc] sm:$0xf] %v581
        $region60: #{tpu_custom_call.1} parent=35 // pred_fallthru
          _
        %s590 = sand.u32 %s139, 1
        %s591 = scalar_lea.sflag [#allocation5], %s590
        %s592 = sand.u32 %s139, 1
        %s593 = smul.addr %s592, 16
        %s594 = scalar_lea.vmem [#allocation11], %s593
        // Predicated region
        $region61: #{tpu_custom_call.1} parent=35 // pred_check
          %p595 = pneg %p149
        $region62: #{tpu_custom_call.1} parent=35 // pred_check_branch
          %597 = sbr.rel (%p595) target = $region64
        $region63: #{tpu_custom_call.1} parent=35 // pred_region
          %s599 = ssub.s32 256, 256
          %600 = vsyncadd %s591, %s599
          %s601 = smul.addr %s27, 4
          %s602 = smul.addr %s601, 64
          %s603 = scalar_lea.hbm %s4, %s602
          %s604 = sshll.u32 %s594, 4
          %s605 = int_to_ptr.vmem [resolvable:$true] %s604
          %610 = dma.vmem_to_hbm [thread:$0]  %s605, 256, %s603, %s591, 64, 64, 4
        $region64: #{tpu_custom_call.1} parent=35 // pred_fallthru
          _
      $region36: #{tpu_custom_call.1} parent=5 // pred_fallthru
        _
      %p611 = scmp.le.s32.totalorder 2, %s18
      // Predicated region
      $region65: #{tpu_custom_call.1} parent=5 // pred_check
        %p612 = pneg %p611
      $region66: #{tpu_custom_call.1} parent=5 // pred_check_branch
        %614 = sbr.rel (%p612) target = $region68
      $region67: #{tpu_custom_call.1} parent=5 // pred_region
        %s615 = ssub.s32 %s18, 2
        // Predicated region
        $region69: #{tpu_custom_call.1} parent=67 // pred_check
          %p616 = pneg %p155
        $region70: #{tpu_custom_call.1} parent=67 // pred_check_branch
          %618 = sbr.rel (%p616) target = $region72
        $region71: #{tpu_custom_call.1} parent=67 // pred_region
          %s619 = sand.u32 %s140, 1
          %s620 = scalar_lea.sflag [#allocation5], %s619
          %s621 = sand.u32 %s140, 1
          %s622 = smul.addr %s621, 16
          %s623 = scalar_lea.vmem [#allocation11], %s622
          %624 = dma.done %s620, 256
        $region72: #{tpu_custom_call.1} parent=67 // pred_fallthru
          _
      $region68: #{tpu_custom_call.1} parent=5 // pred_fallthru
        _
    $region6: #{tpu_custom_call.1} parent=1 // loop_footer
      %s22 = sadd.s32 1, %s18
    $region7: #{tpu_custom_call.1} parent=1 // loop_footer_branch
      %17 = sbr.rel target = $region3
    $region8: #{tpu_custom_call.1} parent=1 // loop_exit
      _
    %625 = vsyncpa [#allocation4], 1
    %s626 = scalar_lea.sflag [#allocation4], 1
    %627 = vsyncpa %s626, 1
    %628 = vsyncpa [#allocation7], 1
    %629 = vsyncpa [#allocation10], 1
    %630 = vsyncpa [#allocation5], 1
    %s631 = scalar_lea.sflag [#allocation5], 1
    %632 = vsyncpa %s631, 1

</llo_original>
